<compile_context>
chip_gen: v5e
topology: v5e:2x2
jax: 0.10.0
libtpu: 0.0.40
codegen_flags: <defaults>
</compile_context>

<pallas_src>
import jax
import jax.numpy as jnp
from jax.experimental import pallas as pl
from jax.experimental.pallas import tpu as pltpu


def baseline_kernel(b_ref, o_ref):
    # forward(*args, **kwargs): return self.b
    # Single SMEM scalar copy — the entire body.
    o_ref[0] = b_ref[0]


@jax.jit
def baseline_forward(b_scalar, *args, **kwargs):
    """Mirrors Baseline.forward: ignores all inputs, returns parameter b."""
    b1 = jnp.asarray(b_scalar, dtype=jnp.float32).reshape(1)
    out = pl.pallas_call(
        baseline_kernel,
        out_shape=jax.ShapeDtypeStruct((1,), jnp.float32),
        in_specs=[pl.BlockSpec(memory_space=pltpu.MemorySpace.SMEM)],
        out_specs=pl.BlockSpec(memory_space=pltpu.MemorySpace.SMEM),
        cost_estimate=pl.CostEstimate(flops=0, transcendentals=0, bytes_accessed=8),
    )(b1)
    return out[0]  # 0-d scalar, like torch.tensor(0.12)


if __name__ == "__main__":
    # Deterministic parameter init (matches nn.Parameter(torch.tensor(0.12)))
    b = jnp.float32(0.12)

    # Example inputs consistent with the module's forward signature
    # (*args, **kwargs) — accepted and ignored, exactly like the PyTorch module.
    key = jax.random.PRNGKey(0)
    x = jax.random.normal(key, (2, 4, 16, 16), dtype=jnp.float32)

    result = baseline_forward(b, x)
    result = jax.block_until_ready(result)

    assert result.shape == ()
    assert result.dtype == jnp.float32
    assert jnp.allclose(result, jnp.float32(0.12)), result

    print("KERNEL_OK")
</pallas_src>

<mosaic_0001>
module attributes {stable_mosaic.version = 11 : i64} {
  func.func @baseline_kernel(%arg0: memref<1xf32, #tpu.memory_space<smem>>, %arg1: memref<1xf32, #tpu.memory_space<smem>>) attributes {dimension_semantics = [], scalar_prefetch = 0 : i64, scratch_operands = 0 : i64, tpu.core_type = #tpu.core_type<tc>} {
    %c0 = arith.constant 0 : index
    %0 = memref.load %arg0[%c0] : memref<1xf32, #tpu.memory_space<smem>>
    %c0_0 = arith.constant 0 : index
    %1 = memref.load %arg1[%c0_0] : memref<1xf32, #tpu.memory_space<smem>>
    memref.store %0, %arg1[%c0_0] : memref<1xf32, #tpu.memory_space<smem>>
    return
  }
}

</mosaic_0001>

<llo_original>
// kernel: baseline_forward.1
$region0: #{baseline_forward.1}
  #allocation0 [shape = 'u32[]', space=smem, size = 0x4, offset = 0x4, fixed_abs, tag = 'smem constant byte address 0x4 - core index']
  #allocation1 [shape = 'u32[72,128]{1,0:T(1,128)}', space=vmem, size = 0x9000, scoped, tag = 'internal scratch']
  #allocation2 [shape = 'f32[1]{0:T(128)S(6)}', space=smem, size = 0x200, scoped, tag = 'scoped memory for baseline_forward.1']
  %s0 = inlined_call_operand.<no memory space> [shape: f32[1], index: 0, kind: input, shape index: {}]
  %s1 = inlined_call_operand.hbm [shape: f32[1], index: 1, kind: output, shape index: {}]
  %s2 = sld [smem:[#allocation0]]
  $region14: #{baseline_forward.1} parent=0
    _
  %s4 = ssub.s32 1, %s2
  %s5 = scalar_select 0, %s4, %s2
  %6 = sst [smem:[#allocation2]] %s0
  $region1: #{baseline_forward.1} parent=0
    #allocation3 [shape = 'u8[512]{0}', space=smem, size = 0x200, scoped, tag = 'output window, operand 0, single buffered']
    #allocation4 [shape = 's32[1]{0}', space=sflag, size = 0x4, scoped, tag = 'scoped memory for baseline_forward.1']
    %7 = vsyncpa [#allocation4], 0
    // Predicated region
    $region2: #{baseline_forward.1} parent=1 // pred_check
      _
    $region3: #{baseline_forward.1} parent=1 // pred_check_branch
      %9 = sbr.rel (0) target = $region5
    $region4: #{baseline_forward.1} parent=1 // pred_region
      _
    $region5: #{baseline_forward.1} parent=1 // pred_fallthru
      _
    %s10 = sld [smem:[#allocation2]]
    %s11 = scalar_lea.smem [#allocation3], 0
    %12 = sst [smem:[%s11]] %s10
    // Predicated region
    $region6: #{baseline_forward.1} parent=1 // pred_check
      _
    $region7: #{baseline_forward.1} parent=1 // pred_check_branch
      %14 = sbr.rel (0) target = $region9
    $region8: #{baseline_forward.1} parent=1 // pred_region
      %16 = vsyncadd [#allocation4], 0
      %s18 = sshll.u32 %s1, 4
      %s19 = int_to_ptr.hbm [resolvable:$true] %s18
      %21 = dma.smem_to_hbm [#allocation3], 16, %s19, [#allocation4]
    $region9: #{baseline_forward.1} parent=1 // pred_fallthru
      _
    // Predicated region
    $region10: #{baseline_forward.1} parent=1 // pred_check
      _
    $region11: #{baseline_forward.1} parent=1 // pred_check_branch
      %23 = sbr.rel (0) target = $region13
    $region12: #{baseline_forward.1} parent=1 // pred_region
      %25 = dma.done [#allocation4], 16
    $region13: #{baseline_forward.1} parent=1 // pred_fallthru
      _
    %26 = sfence
    %27 = vsyncpa [#allocation4], 1

</llo_original>
